<compile_context>
chip_gen: v7x
topology: tpu7x:2x2x1
jax: 0.10.0
libtpu: 0.0.40
codegen_flags: <defaults>
</compile_context>

<pallas_src>
import math

import jax
import jax.numpy as jnp
from jax.experimental import pallas as pl
from jax.experimental.pallas import tpu as pltpu  # noqa: F401  (TPU backend)

# ---- model dimensions (small, consistent with the module) -------------------
N, H, W, CIN = 2, 16, 16, 3
COUT = 32            # featurizer.in_features (conv channels -> GAP feature dim)
FEA_DIM = 32         # args.proj_dim[args.dataset]
NUM_CLASSES = 16     # args.num_classes
KH = KW = 3
K_RAW = KH * KW * CIN          # 27 conv taps * channels
K_PAD = 32                      # padded contraction: 27 taps + 1 bias col + 4 zero
HEAD_PAD = 128                  # lane-dense combined output width
PIX = N * H * W                 # 512 output pixels


# ---- fused kernel: im2col-conv + ReLU + GAP + encoder + classifier ----------
def _ratp_fused_kernel(xcols_ref, wconv_ref, pool_ref, wenc_ref, benc_ref,
                       whead_ref, out_ref):
    # xcols_ref: (PIX, K_PAD)   im2col patches (+ ones column for conv bias)
    # wconv_ref: (K_PAD, COUT)  [conv taps ; conv bias ; zero pad]
    # pool_ref : (N, PIX)       block-diagonal 1/(H*W)  -> GAP as a matmul
    # wenc_ref : (COUT, FEA_DIM) encoder weight (transposed)
    # benc_ref : (1, FEA_DIM)    encoder bias
    # whead_ref: (FEA_DIM, HEAD_PAD) = [I_32 | classifier^T | 0]
    # out_ref  : (N, HEAD_PAD)   lanes 0:32 = fea_rep, 32:48 = pred

    # conv3x3 (+bias folded into K) as a single MXU pass, then ReLU
    conv = jnp.maximum(
        jnp.dot(xcols_ref[...], wconv_ref[...],
                preferred_element_type=jnp.float32), 0.0)
    # global average pool via matmul (no reshape / XLU reduction)
    feat = jnp.dot(pool_ref[...], conv, preferred_element_type=jnp.float32)
    # encoder Linear
    z = jnp.dot(feat, wenc_ref[...],
                preferred_element_type=jnp.float32) + benc_ref[...]
    # combined head: identity columns give fea_rep exactly, next 16 give pred
    out_ref[...] = jnp.dot(z, whead_ref[...],
                           preferred_element_type=jnp.float32)


# ---- wrapper ----------------------------------------------------------------
def _full_spec(shape):
    ndim = len(shape)
    return pl.BlockSpec(shape, lambda i, _n=ndim: (0,) * _n)


def ratp_forward(x_nhwc, params):
    """Returns (pred, fea_rep), exactly like RaTP.forward + self.fea_rep."""
    # im2col in the wrapper (SAME padding); tap order (dy, dx, cin) matches the
    # row order of w_conv.reshape(K_RAW, COUT).
    xp = jnp.pad(x_nhwc, ((0, 0), (1, 1), (1, 1), (0, 0)))
    taps = [xp[:, dy:dy + H, dx:dx + W, :]
            for dy in range(KH) for dx in range(KW)]
    patches = jnp.stack(taps, axis=3)                     # (N, H, W, 9, CIN)
    x_cols = patches.reshape(PIX, K_RAW)
    x_cols = jnp.concatenate(
        [x_cols,
         jnp.ones((PIX, 1), jnp.float32),                 # bias column
         jnp.zeros((PIX, K_PAD - K_RAW - 1), jnp.float32)], axis=1)  # (512, 32)

    out = pl.pallas_call(
        _ratp_fused_kernel,
        grid=(1,),
        in_specs=[
            _full_spec(x_cols.shape),
            _full_spec(params["w_conv_mat"].shape),
            _full_spec(params["pool"].shape),
            _full_spec(params["w_enc_t"].shape),
            _full_spec(params["b_enc"].shape),
            _full_spec(params["w_head"].shape),
        ],
        out_specs=_full_spec((N, HEAD_PAD)),
        out_shape=jax.ShapeDtypeStruct((N, HEAD_PAD), jnp.float32),
    )(x_cols, params["w_conv_mat"], params["pool"], params["w_enc_t"],
      params["b_enc"], params["w_head"])

    fea_rep = out[:, :FEA_DIM]                            # self.fea_rep
    pred = out[:, FEA_DIM:FEA_DIM + NUM_CLASSES]
    return pred, fea_rep
    # TODO(synk): at realistic batch/resolution, add a leading "parallel" grid
    # axis over N/H tiles (shards across v7x's 2 TensorCores) and switch to
    # tiled BlockSpecs sized against v7x's 32 MiB scoped VMEM.


def init_params(key):
    k_conv, k_enc, k_cls = jax.random.split(key, 3)

    # Conv2d init from RaTP._initialize_weights: N(0, sqrt(2/(kh*kw*out_ch)))
    conv_std = math.sqrt(2.0 / (KH * KW * COUT))
    w_conv = conv_std * jax.random.normal(k_conv, (KH, KW, CIN, COUT),
                                          dtype=jnp.float32)
    b_conv = jnp.zeros((COUT,), jnp.float32)

    # Linear init from RaTP._initialize_weights: N(0, 0.01), bias = 0
    w_enc = 0.01 * jax.random.normal(k_enc, (FEA_DIM, COUT), dtype=jnp.float32)
    b_enc = jnp.zeros((1, FEA_DIM), jnp.float32)

    # classifier: kaiming_uniform_(mode='fan_out', a=sqrt(5)) on (NC, FEA_DIM)
    bound = 1.0 / math.sqrt(NUM_CLASSES)
    w_cls = jax.random.uniform(k_cls, (NUM_CLASSES, FEA_DIM),
                               minval=-bound, maxval=bound, dtype=jnp.float32)

    # ---- pack / pad for the fused kernel ----
    w_conv_mat = jnp.concatenate(
        [w_conv.reshape(K_RAW, COUT),                     # conv taps
         b_conv[None, :],                                 # conv bias row
         jnp.zeros((K_PAD - K_RAW - 1, COUT), jnp.float32)], axis=0)  # (32, 32)

    pool = jnp.kron(jnp.eye(N, dtype=jnp.float32),
                    jnp.full((1, H * W), 1.0 / (H * W), jnp.float32))  # (N, PIX)

    w_enc_t = jnp.transpose(w_enc)                        # (COUT, FEA_DIM)
    w_cls_t = jnp.transpose(w_cls)                        # (FEA_DIM, NUM_CLASSES)
    w_head = jnp.concatenate(
        [jnp.eye(FEA_DIM, dtype=jnp.float32),             # identity -> fea_rep
         w_cls_t,                                         # classifier -> pred
         jnp.zeros((FEA_DIM, HEAD_PAD - FEA_DIM - NUM_CLASSES), jnp.float32)],
        axis=1)                                           # (32, 128)

    return {"w_conv_mat": w_conv_mat, "pool": pool, "w_enc_t": w_enc_t,
            "b_enc": b_enc, "w_head": w_head,
            # raw weights kept only for the pure-JAX reference check
            "w_conv": w_conv, "b_conv": b_conv, "w_enc": w_enc, "w_cls": w_cls}


def ratp_reference(x_nhwc, params):
    """Pure-JAX reference of the same forward (for correctness checking)."""
    hp = jax.lax.Precision.HIGHEST
    conv = jax.lax.conv_general_dilated(
        x_nhwc, params["w_conv"], window_strides=(1, 1), padding="SAME",
        dimension_numbers=("NHWC", "HWIO", "NHWC"), precision=hp)
    conv = jnp.maximum(conv + params["b_conv"], 0.0)
    feat = conv.mean(axis=(1, 2))                                   # GAP
    z = jnp.dot(feat, params["w_enc"].T, precision=hp) + params["b_enc"]
    pred = jnp.dot(z, params["w_cls"].T, precision=hp)
    return pred, z


# TODO(synk): training-time pieces (RandMix augmentation, Normalize transform,
# PCA/PCL losses, distillation, SGD optimizer) are not part of forward() and
# are not implemented.

if __name__ == "__main__":
    key = jax.random.PRNGKey(0)
    k_x, k_p = jax.random.split(key)
    # PyTorch forward expects NCHW (2, 3, 16, 16); kernel layout is NHWC.
    x_nchw = jax.random.normal(k_x, (N, CIN, H, W), dtype=jnp.float32)
    x_nhwc = jnp.transpose(x_nchw, (0, 2, 3, 1))

    params = init_params(k_p)
    pred, fea_rep = jax.jit(ratp_forward)(x_nhwc, params)
    jax.block_until_ready((pred, fea_rep))

    assert pred.shape == (N, NUM_CLASSES) and fea_rep.shape == (N, FEA_DIM)
    pred_ref, fea_ref = ratp_reference(x_nhwc, params)
    assert jnp.allclose(pred, pred_ref, atol=2e-3, rtol=2e-3)
    assert jnp.allclose(fea_rep, fea_ref, atol=2e-3, rtol=2e-3)
    print("KERNEL_OK")
</pallas_src>

<mosaic_0001>
module attributes {stable_mosaic.version = 11 : i64} {
  func.func @_ratp_fused_kernel(%arg0: i32, %arg1: memref<512x32xf32, #tpu.memory_space<vmem>>, %arg2: memref<32x32xf32, #tpu.memory_space<vmem>>, %arg3: memref<2x512xf32, #tpu.memory_space<vmem>>, %arg4: memref<32x32xf32, #tpu.memory_space<vmem>>, %arg5: memref<1x32xf32, #tpu.memory_space<vmem>>, %arg6: memref<32x128xf32, #tpu.memory_space<vmem>>, %arg7: memref<2x128xf32, #tpu.memory_space<vmem>>) attributes {dimension_semantics = [#tpu.dimension_semantics<arbitrary>], iteration_bounds = array<i64: 1>, scalar_prefetch = 0 : i64, scratch_operands = 0 : i64, tpu.core_type = #tpu.core_type<tc>, window_params = [{pipeline_mode = #tpu.pipeline_mode<synchronous>, transform_indices = @transform_0, window_bounds = array<i64: 512, 32>}, {pipeline_mode = #tpu.pipeline_mode<synchronous>, transform_indices = @transform_1, window_bounds = array<i64: 32, 32>}, {pipeline_mode = #tpu.pipeline_mode<synchronous>, transform_indices = @transform_2, window_bounds = array<i64: 2, 512>}, {pipeline_mode = #tpu.pipeline_mode<synchronous>, transform_indices = @transform_3, window_bounds = array<i64: 32, 32>}, {pipeline_mode = #tpu.pipeline_mode<synchronous>, transform_indices = @transform_4, window_bounds = array<i64: 1, 32>}, {pipeline_mode = #tpu.pipeline_mode<synchronous>, transform_indices = @transform_5, window_bounds = array<i64: 32, 128>}, {pipeline_mode = #tpu.pipeline_mode<synchronous>, transform_indices = @transform_6, window_bounds = array<i64: 2, 128>}]} {
    %c0 = arith.constant 0 : index
    %c0_0 = arith.constant 0 : index
    %0 = vector.load %arg1[%c0, %c0_0] : memref<512x32xf32, #tpu.memory_space<vmem>>, vector<512x32xf32>
    %c0_1 = arith.constant 0 : index
    %c0_2 = arith.constant 0 : index
    %1 = vector.load %arg2[%c0_1, %c0_2] : memref<32x32xf32, #tpu.memory_space<vmem>>, vector<32x32xf32>
    %cst = arith.constant dense<0.000000e+00> : vector<512x32xf32>
    %2 = tpu.matmul %0, %1, %cst {dimension_numbers = #tpu.dot_dimension_numbers<[1], [0], [0], [1], [0, 0, 1, 1], [], []>} : vector<512x32xf32>, vector<32x32xf32>, vector<512x32xf32> -> vector<512x32xf32>
    %cst_3 = arith.constant 0.000000e+00 : f32
    %3 = vector.broadcast %cst_3 : f32 to vector<512x32xf32>
    %4 = arith.maximumf %2, %3 : vector<512x32xf32>
    %c0_4 = arith.constant 0 : index
    %c0_5 = arith.constant 0 : index
    %5 = vector.load %arg3[%c0_4, %c0_5] : memref<2x512xf32, #tpu.memory_space<vmem>>, vector<2x512xf32>
    %cst_6 = arith.constant dense<0.000000e+00> : vector<2x32xf32>
    %6 = tpu.matmul %5, %4, %cst_6 {dimension_numbers = #tpu.dot_dimension_numbers<[1], [0], [0], [1], [0, 0, 1, 1], [], []>} : vector<2x512xf32>, vector<512x32xf32>, vector<2x32xf32> -> vector<2x32xf32>
    %c0_7 = arith.constant 0 : index
    %c0_8 = arith.constant 0 : index
    %7 = vector.load %arg4[%c0_7, %c0_8] : memref<32x32xf32, #tpu.memory_space<vmem>>, vector<32x32xf32>
    %cst_9 = arith.constant dense<0.000000e+00> : vector<2x32xf32>
    %8 = tpu.matmul %6, %7, %cst_9 {dimension_numbers = #tpu.dot_dimension_numbers<[1], [0], [0], [1], [0, 0, 1, 1], [], []>} : vector<2x32xf32>, vector<32x32xf32>, vector<2x32xf32> -> vector<2x32xf32>
    %c0_10 = arith.constant 0 : index
    %c0_11 = arith.constant 0 : index
    %9 = vector.load %arg5[%c0_10, %c0_11] : memref<1x32xf32, #tpu.memory_space<vmem>>, vector<1x32xf32>
    %10 = vector.broadcast %9 : vector<1x32xf32> to vector<2x32xf32>
    %11 = arith.addf %8, %10 : vector<2x32xf32>
    %c0_12 = arith.constant 0 : index
    %c0_13 = arith.constant 0 : index
    %12 = vector.load %arg6[%c0_12, %c0_13] : memref<32x128xf32, #tpu.memory_space<vmem>>, vector<32x128xf32>
    %cst_14 = arith.constant dense<0.000000e+00> : vector<2x128xf32>
    %13 = tpu.matmul %11, %12, %cst_14 {dimension_numbers = #tpu.dot_dimension_numbers<[1], [0], [0], [1], [0, 0, 1, 1], [], []>} : vector<2x32xf32>, vector<32x128xf32>, vector<2x128xf32> -> vector<2x128xf32>
    %c0_15 = arith.constant 0 : index
    %c0_16 = arith.constant 0 : index
    %14 = vector.load %arg7[%c0_15, %c0_16] : memref<2x128xf32, #tpu.memory_space<vmem>>, vector<2x128xf32>
    tpu.vector_store %arg7[%c0_15, %c0_16], %13 {strides = array<i32>} : memref<2x128xf32, #tpu.memory_space<vmem>>, vector<2x128xf32>,
    return
  }
  func.func @transform_0(%arg0: i32) -> (i32, i32) {
    %c0_i32 = arith.constant 0 : i32
    %c0_i32_0 = arith.constant 0 : i32
    %c0_i32_1 = arith.constant 0 : i32
    return %c0_i32, %c0_i32_0 : i32, i32
  }
  func.func @transform_1(%arg0: i32) -> (i32, i32) {
    %c0_i32 = arith.constant 0 : i32
    %c0_i32_0 = arith.constant 0 : i32
    %c0_i32_1 = arith.constant 0 : i32
    return %c0_i32, %c0_i32_0 : i32, i32
  }
  func.func @transform_2(%arg0: i32) -> (i32, i32) {
    %c0_i32 = arith.constant 0 : i32
    %c0_i32_0 = arith.constant 0 : i32
    %c0_i32_1 = arith.constant 0 : i32
    return %c0_i32, %c0_i32_0 : i32, i32
  }
  func.func @transform_3(%arg0: i32) -> (i32, i32) {
    %c0_i32 = arith.constant 0 : i32
    %c0_i32_0 = arith.constant 0 : i32
    %c0_i32_1 = arith.constant 0 : i32
    return %c0_i32, %c0_i32_0 : i32, i32
  }
  func.func @transform_4(%arg0: i32) -> (i32, i32) {
    %c0_i32 = arith.constant 0 : i32
    %c0_i32_0 = arith.constant 0 : i32
    %c0_i32_1 = arith.constant 0 : i32
    return %c0_i32, %c0_i32_0 : i32, i32
  }
  func.func @transform_5(%arg0: i32) -> (i32, i32) {
    %c0_i32 = arith.constant 0 : i32
    %c0_i32_0 = arith.constant 0 : i32
    %c0_i32_1 = arith.constant 0 : i32
    return %c0_i32, %c0_i32_0 : i32, i32
  }
  func.func @transform_6(%arg0: i32) -> (i32, i32) {
    %c0_i32 = arith.constant 0 : i32
    %c0_i32_0 = arith.constant 0 : i32
    %c0_i32_1 = arith.constant 0 : i32
    return %c0_i32, %c0_i32_0 : i32, i32
  }
}

</mosaic_0001>

<llo_original>
// kernel: ratp_forward.1
$region0: #{ratp_forward.1}
  #allocation0 [shape = 'u32[]', space=smem, size = 0x4, offset = 0x4, fixed_abs, tag = 'smem constant byte address 0x4 - core index']
  #allocation1 [shape = 'u32[144,128]{1,0:T(1,128)}', space=vmem, size = 0x12000, scoped, tag = 'internal scratch']
  %s0 = inlined_call_operand.vmem [shape: f32[512,32], index: 0, kind: input, shape index: {}]
  %s1 = inlined_call_operand.vmem [shape: f32[32,32], index: 1, kind: input, shape index: {}]
  %s2 = inlined_call_operand.vmem [shape: f32[2,512], index: 2, kind: input, shape index: {}]
  %s3 = inlined_call_operand.vmem [shape: f32[32,32], index: 3, kind: input, shape index: {}]
  %s4 = inlined_call_operand.vmem [shape: f32[1,32], index: 4, kind: input, shape index: {}]
  %s5 = inlined_call_operand.vmem [shape: f32[32,128], index: 5, kind: input, shape index: {}]
  %s6 = inlined_call_operand.vmem [shape: f32[2,128], index: 6, kind: output, shape index: {}]
  %s7 = sld [smem:[#allocation0]]
  $region34: #{ratp_forward.1} parent=0
    _
  %s9 = ssub.s32 1, %s7
  %s10 = scalar_select 0, %s9, %s7
  // Predicated region
  $region2: #{ratp_forward.1} parent=0 // pred_check
    _
  $region3: #{ratp_forward.1} parent=0 // pred_check_branch
    %12 = sbr.rel (0) target = $region5
  $region4: #{ratp_forward.1} parent=0 // pred_region
    _
  $region5: #{ratp_forward.1} parent=0 // pred_fallthru
    _
  // Predicated region
  $region6: #{ratp_forward.1} parent=0 // pred_check
    _
  $region7: #{ratp_forward.1} parent=0 // pred_check_branch
    %14 = sbr.rel (0) target = $region9
  $region8: #{ratp_forward.1} parent=0 // pred_region
    _
  $region9: #{ratp_forward.1} parent=0 // pred_fallthru
    _
  // Predicated region
  $region10: #{ratp_forward.1} parent=0 // pred_check
    _
  $region11: #{ratp_forward.1} parent=0 // pred_check_branch
    %16 = sbr.rel (0) target = $region13
  $region12: #{ratp_forward.1} parent=0 // pred_region
    _
  $region13: #{ratp_forward.1} parent=0 // pred_fallthru
    _
  // Predicated region
  $region14: #{ratp_forward.1} parent=0 // pred_check
    _
  $region15: #{ratp_forward.1} parent=0 // pred_check_branch
    %18 = sbr.rel (0) target = $region17
  $region16: #{ratp_forward.1} parent=0 // pred_region
    _
  $region17: #{ratp_forward.1} parent=0 // pred_fallthru
    _
  // Predicated region
  $region18: #{ratp_forward.1} parent=0 // pred_check
    _
  $region19: #{ratp_forward.1} parent=0 // pred_check_branch
    %20 = sbr.rel (0) target = $region21
  $region20: #{ratp_forward.1} parent=0 // pred_region
    _
  $region21: #{ratp_forward.1} parent=0 // pred_fallthru
    _
  // Predicated region
  $region22: #{ratp_forward.1} parent=0 // pred_check
    _
  $region23: #{ratp_forward.1} parent=0 // pred_check_branch
    %22 = sbr.rel (0) target = $region25
  $region24: #{ratp_forward.1} parent=0 // pred_region
    _
  $region25: #{ratp_forward.1} parent=0 // pred_fallthru
    _
  %v23 = vld [vmem:[%s0] sm:$0xff]
  %v24 = vld [vmem:[%s0 + $0x8] sm:$0xff]
  %v25 = vld [vmem:[%s0 + $0x10] sm:$0xff]
  %v26 = vld [vmem:[%s0 + $0x18] sm:$0xff]
  %v27 = vld [vmem:[%s0 + $0x20] sm:$0xff]
  %v28 = vld [vmem:[%s0 + $0x28] sm:$0xff]
  %v29 = vld [vmem:[%s0 + $0x30] sm:$0xff]
  %v30 = vld [vmem:[%s0 + $0x38] sm:$0xff]
  %v31 = vld [vmem:[%s0 + $0x40] sm:$0xff]
  %v32 = vld [vmem:[%s0 + $0x48] sm:$0xff]
  %v33 = vld [vmem:[%s0 + $0x50] sm:$0xff]
  %v34 = vld [vmem:[%s0 + $0x58] sm:$0xff]
  %v35 = vld [vmem:[%s0 + $0x60] sm:$0xff]
  %v36 = vld [vmem:[%s0 + $0x68] sm:$0xff]
  %v37 = vld [vmem:[%s0 + $0x70] sm:$0xff]
  %v38 = vld [vmem:[%s0 + $0x78] sm:$0xff]
  %v39 = vld [vmem:[%s0 + $0x80] sm:$0xff]
  %v40 = vld [vmem:[%s0 + $0x88] sm:$0xff]
  %v41 = vld [vmem:[%s0 + $0x90] sm:$0xff]
  %v42 = vld [vmem:[%s0 + $0x98] sm:$0xff]
  %v43 = vld [vmem:[%s0 + $0xa0] sm:$0xff]
  %v44 = vld [vmem:[%s0 + $0xa8] sm:$0xff]
  %v45 = vld [vmem:[%s0 + $0xb0] sm:$0xff]
  %v46 = vld [vmem:[%s0 + $0xb8] sm:$0xff]
  %v47 = vld [vmem:[%s0 + $0xc0] sm:$0xff]
  %v48 = vld [vmem:[%s0 + $0xc8] sm:$0xff]
  %v49 = vld [vmem:[%s0 + $0xd0] sm:$0xff]
  %v50 = vld [vmem:[%s0 + $0xd8] sm:$0xff]
  %v51 = vld [vmem:[%s0 + $0xe0] sm:$0xff]
  %v52 = vld [vmem:[%s0 + $0xe8] sm:$0xff]
  %v53 = vld [vmem:[%s0 + $0xf0] sm:$0xff]
  %v54 = vld [vmem:[%s0 + $0xf8] sm:$0xff]
  %v55 = vld [vmem:[%s0 + $0x100] sm:$0xff]
  %v56 = vld [vmem:[%s0 + $0x108] sm:$0xff]
  %v57 = vld [vmem:[%s0 + $0x110] sm:$0xff]
  %v58 = vld [vmem:[%s0 + $0x118] sm:$0xff]
  %v59 = vld [vmem:[%s0 + $0x120] sm:$0xff]
  %v60 = vld [vmem:[%s0 + $0x128] sm:$0xff]
  %v61 = vld [vmem:[%s0 + $0x130] sm:$0xff]
  %v62 = vld [vmem:[%s0 + $0x138] sm:$0xff]
  %v63 = vld [vmem:[%s0 + $0x140] sm:$0xff]
  %v64 = vld [vmem:[%s0 + $0x148] sm:$0xff]
  %v65 = vld [vmem:[%s0 + $0x150] sm:$0xff]
  %v66 = vld [vmem:[%s0 + $0x158] sm:$0xff]
  %v67 = vld [vmem:[%s0 + $0x160] sm:$0xff]
  %v68 = vld [vmem:[%s0 + $0x168] sm:$0xff]
  %v69 = vld [vmem:[%s0 + $0x170] sm:$0xff]
  %v70 = vld [vmem:[%s0 + $0x178] sm:$0xff]
  %v71 = vld [vmem:[%s0 + $0x180] sm:$0xff]
  %v72 = vld [vmem:[%s0 + $0x188] sm:$0xff]
  %v73 = vld [vmem:[%s0 + $0x190] sm:$0xff]
  %v74 = vld [vmem:[%s0 + $0x198] sm:$0xff]
  %v75 = vld [vmem:[%s0 + $0x1a0] sm:$0xff]
  %v76 = vld [vmem:[%s0 + $0x1a8] sm:$0xff]
  %v77 = vld [vmem:[%s0 + $0x1b0] sm:$0xff]
  %v78 = vld [vmem:[%s0 + $0x1b8] sm:$0xff]
  %v79 = vld [vmem:[%s0 + $0x1c0] sm:$0xff]
  %v80 = vld [vmem:[%s0 + $0x1c8] sm:$0xff]
  %v81 = vld [vmem:[%s0 + $0x1d0] sm:$0xff]
  %v82 = vld [vmem:[%s0 + $0x1d8] sm:$0xff]
  %v83 = vld [vmem:[%s0 + $0x1e0] sm:$0xff]
  %v84 = vld [vmem:[%s0 + $0x1e8] sm:$0xff]
  %v85 = vld [vmem:[%s0 + $0x1f0] sm:$0xff]
  %v86 = vld [vmem:[%s0 + $0x1f8] sm:$0xff]
  %v87 = vld [vmem:[%s1] sm:$0xff]
  %v88 = vld [vmem:[%s1 + $0x8] sm:$0xff]
  %v89 = vld [vmem:[%s1 + $0x10] sm:$0xff]
  %v90 = vld [vmem:[%s1 + $0x18] sm:$0xff]
  %vm91 = vcmask 261120
  %v93 = vsel %vm91, %v23, 0
  %v96 = vsel %vm91, %v24, 0
  %v99 = vsel %vm91, %v25, 0
  %v102 = vsel %vm91, %v26, 0
  %v105 = vsel %vm91, %v27, 0
  %v108 = vsel %vm91, %v28, 0
  %v111 = vsel %vm91, %v29, 0
  %v114 = vsel %vm91, %v30, 0
  %v117 = vsel %vm91, %v31, 0
  %v120 = vsel %vm91, %v32, 0
  %v123 = vsel %vm91, %v33, 0
  %v126 = vsel %vm91, %v34, 0
  %v129 = vsel %vm91, %v35, 0
  %v132 = vsel %vm91, %v36, 0
  %v135 = vsel %vm91, %v37, 0
  %v138 = vsel %vm91, %v38, 0
  %v141 = vsel %vm91, %v39, 0
  %v144 = vsel %vm91, %v40, 0
  %v147 = vsel %vm91, %v41, 0
  %v150 = vsel %vm91, %v42, 0
  %v153 = vsel %vm91, %v43, 0
  %v156 = vsel %vm91, %v44, 0
  %v159 = vsel %vm91, %v45, 0
  %v162 = vsel %vm91, %v46, 0
  %v165 = vsel %vm91, %v47, 0
  %v168 = vsel %vm91, %v48, 0
  %v171 = vsel %vm91, %v49, 0
  %v174 = vsel %vm91, %v50, 0
  %v177 = vsel %vm91, %v51, 0
  %v180 = vsel %vm91, %v52, 0
  %v183 = vsel %vm91, %v53, 0
  %v186 = vsel %vm91, %v54, 0
  %v189 = vsel %vm91, %v55, 0
  %v192 = vsel %vm91, %v56, 0
  %v195 = vsel %vm91, %v57, 0
  %v198 = vsel %vm91, %v58, 0
  %v201 = vsel %vm91, %v59, 0
  %v204 = vsel %vm91, %v60, 0
  %v207 = vsel %vm91, %v61, 0
  %v210 = vsel %vm91, %v62, 0
  %v213 = vsel %vm91, %v63, 0
  %v216 = vsel %vm91, %v64, 0
  %v219 = vsel %vm91, %v65, 0
  %v222 = vsel %vm91, %v66, 0
  %v225 = vsel %vm91, %v67, 0
  %v228 = vsel %vm91, %v68, 0
  %v231 = vsel %vm91, %v69, 0
  %v234 = vsel %vm91, %v70, 0
  %v237 = vsel %vm91, %v71, 0
  %v240 = vsel %vm91, %v72, 0
  %v243 = vsel %vm91, %v73, 0
  %v246 = vsel %vm91, %v74, 0
  %v249 = vsel %vm91, %v75, 0
  %v252 = vsel %vm91, %v76, 0
  %v255 = vsel %vm91, %v77, 0
  %v258 = vsel %vm91, %v78, 0
  %v261 = vsel %vm91, %v79, 0
  %v264 = vsel %vm91, %v80, 0
  %v267 = vsel %vm91, %v81, 0
  %v270 = vsel %vm91, %v82, 0
  %v273 = vsel %vm91, %v83, 0
  %v276 = vsel %vm91, %v84, 0
  %v279 = vsel %vm91, %v85, 0
  %v282 = vsel %vm91, %v86, 0
  %284 = vmatprep.subr.mxu0 0.0
  %285 = vmatpush1.msra.mxu0 %v87
  %286 = vmatprep.subr.mxu0 0.0
  %287 = vmatpush1.msra.mxu0 %v88
  %288 = vmatprep.subr.mxu0 0.0
  %289 = vmatpush1.msra.mxu0 %v89
  %290 = vmatprep.subr.mxu0 0.0
  %291 = vmatpush1.msra.mxu0 %v90
  %292 = vmatprep.subr.mxu0 0.0
  %293 = vmatpush1.msra.mxu0 0.0
  %294 = vmatprep.subr.mxu0 0.0
  %295 = vmatpush1.msra.mxu0 0.0
  %296 = vmatprep.subr.mxu0 0.0
  %297 = vmatpush1.msra.mxu0 0.0
  %298 = vmatprep.subr.mxu0 0.0
  %299 = vmatpush1.msra.mxu0 0.0
  %300 = vmatprep.subr.mxu0 0.0
  %301 = vmatpush1.msra.mxu0 0.0
  %302 = vmatprep.subr.mxu0 0.0
  %303 = vmatpush1.msra.mxu0 0.0
  %304 = vmatprep.subr.mxu0 0.0
  %305 = vmatpush1.msra.mxu0 0.0
  %306 = vmatprep.subr.mxu0 0.0
  %307 = vmatpush1.msra.mxu0 0.0
  %308 = vmatprep.subr.mxu0 0.0
  %309 = vmatpush1.msra.mxu0 0.0
  %310 = vmatprep.subr.mxu0 0.0
  %311 = vmatpush1.msra.mxu0 0.0
  %312 = vmatprep.subr.mxu0 0.0
  %313 = vmatpush1.msra.mxu0 0.0
  %314 = vmatprep.subr.mxu0 0.0
  %315 = vmatpush1.msra.mxu0 0.0
  %316 = vmatprep.subr.mxu0 0.0
  %317 = vmatpush1.msra.mxu0 0.0
  %318 = vmatprep.subr.mxu0 0.0
  %319 = vmatpush1.msra.mxu0 0.0
  %320 = vmatprep.subr.mxu0 0.0
  %321 = vmatpush1.msra.mxu0 0.0
  %322 = vmatprep.subr.mxu0 0.0
  %323 = vmatpush1.msra.mxu0 0.0
  %324 = vmatprep.subr.mxu0 0.0
  %325 = vmatpush1.msra.mxu0 0.0
  %326 = vmatprep.subr.mxu0 0.0
  %327 = vmatpush1.msra.mxu0 0.0
  %328 = vmatprep.subr.mxu0 0.0
  %329 = vmatpush1.msra.mxu0 0.0
  %330 = vmatprep.subr.mxu0 0.0
  %331 = vmatpush1.msra.mxu0 0.0
  %332 = vmatprep.subr.mxu0 0.0
  %333 = vmatpush1.msra.mxu0 0.0
  %334 = vmatprep.subr.mxu0 0.0
  %335 = vmatpush1.msra.mxu0 0.0
  %336 = vmatprep.subr.mxu0 0.0
  %337 = vmatpush1.msra.mxu0 0.0
  %338 = vmatprep.subr.mxu0 0.0
  %339 = vmatpush1.msra.mxu0 0.0
  %340 = vmatprep.subr.mxu0 0.0
  %341 = vmatpush1.msra.mxu0 0.0
  %342 = vmatprep.subr.mxu0 0.0
  %343 = vmatpush1.msra.mxu0 0.0
  %344 = vmatprep.subr.mxu0 0.0
  %345 = vmatpush1.msra.mxu0 0.0
  %346 = vmatprep.subr.mxu0 0.0
  %347 = vmatpush1.msra.mxu0 0.0
  %348 = vmatprep.mubr.f32.mxu0 0.0
  %349 = vmatmul.mubr.f32.gmra.mrb[0].mxu0 %v93
  %v350 = vpop.f32.mrb[0].mxu0
  %v351 = vadd.f32 0.0, %v350
  %v352 = vpop.f32.mrb[0].mxu0
  %353 = vmatprep.mubr.f32.mxu0 0.0
  %354 = vmatmul.mubr.f32.gmra.mrb[0].mxu0 %v96
  %v355 = vpop.f32.mrb[0].mxu0
  %v356 = vadd.f32 0.0, %v355
  %v357 = vpop.f32.mrb[0].mxu0
  %358 = vmatprep.mubr.f32.mxu0 0.0
  %359 = vmatmul.mubr.f32.gmra.mrb[0].mxu0 %v99
  %v360 = vpop.f32.mrb[0].mxu0
  %v361 = vadd.f32 0.0, %v360
  %v362 = vpop.f32.mrb[0].mxu0
  %363 = vmatprep.mubr.f32.mxu0 0.0
  %364 = vmatmul.mubr.f32.gmra.mrb[0].mxu0 %v102
  %v365 = vpop.f32.mrb[0].mxu0
  %v366 = vadd.f32 0.0, %v365
  %v367 = vpop.f32.mrb[0].mxu0
  %368 = vmatprep.mubr.f32.mxu0 0.0
  %369 = vmatmul.mubr.f32.gmra.mrb[0].mxu0 %v105
  %v370 = vpop.f32.mrb[0].mxu0
  %v371 = vadd.f32 0.0, %v370
  %v372 = vpop.f32.mrb[0].mxu0
  %373 = vmatprep.mubr.f32.mxu0 0.0
  %374 = vmatmul.mubr.f32.gmra.mrb[0].mxu0 %v108
  %v375 = vpop.f32.mrb[0].mxu0
  %v376 = vadd.f32 0.0, %v375
  %v377 = vpop.f32.mrb[0].mxu0
  %378 = vmatprep.mubr.f32.mxu0 0.0
  %379 = vmatmul.mubr.f32.gmra.mrb[0].mxu0 %v111
  %v380 = vpop.f32.mrb[0].mxu0
  %v381 = vadd.f32 0.0, %v380
  %v382 = vpop.f32.mrb[0].mxu0
  %383 = vmatprep.mubr.f32.mxu0 0.0
  %384 = vmatmul.mubr.f32.gmra.mrb[0].mxu0 %v114
  %v385 = vpop.f32.mrb[0].mxu0
  %v386 = vadd.f32 0.0, %v385
  %v387 = vpop.f32.mrb[0].mxu0
  %388 = vmatprep.mubr.f32.mxu0 0.0
  %389 = vmatmul.mubr.f32.gmra.mrb[0].mxu0 %v117
  %v390 = vpop.f32.mrb[0].mxu0
  %v391 = vadd.f32 0.0, %v390
  %v392 = vpop.f32.mrb[0].mxu0
  %393 = vmatprep.mubr.f32.mxu0 0.0
  %394 = vmatmul.mubr.f32.gmra.mrb[0].mxu0 %v120
  %v395 = vpop.f32.mrb[0].mxu0
  %v396 = vadd.f32 0.0, %v395
  %v397 = vpop.f32.mrb[0].mxu0
  %398 = vmatprep.mubr.f32.mxu0 0.0
  %399 = vmatmul.mubr.f32.gmra.mrb[0].mxu0 %v123
  %v400 = vpop.f32.mrb[0].mxu0
  %v401 = vadd.f32 0.0, %v400
  %v402 = vpop.f32.mrb[0].mxu0
  %403 = vmatprep.mubr.f32.mxu0 0.0
  %404 = vmatmul.mubr.f32.gmra.mrb[0].mxu0 %v126
  %v405 = vpop.f32.mrb[0].mxu0
  %v406 = vadd.f32 0.0, %v405
  %v407 = vpop.f32.mrb[0].mxu0
  %408 = vmatprep.mubr.f32.mxu0 0.0
  %409 = vmatmul.mubr.f32.gmra.mrb[0].mxu0 %v129
  %v410 = vpop.f32.mrb[0].mxu0
  %v411 = vadd.f32 0.0, %v410
  %v412 = vpop.f32.mrb[0].mxu0
  %413 = vmatprep.mubr.f32.mxu0 0.0
  %414 = vmatmul.mubr.f32.gmra.mrb[0].mxu0 %v132
  %v415 = vpop.f32.mrb[0].mxu0
  %v416 = vadd.f32 0.0, %v415
  %v417 = vpop.f32.mrb[0].mxu0
  %418 = vmatprep.mubr.f32.mxu0 0.0
  %419 = vmatmul.mubr.f32.gmra.mrb[0].mxu0 %v135
  %v420 = vpop.f32.mrb[0].mxu0
  %v421 = vadd.f32 0.0, %v420
  %v422 = vpop.f32.mrb[0].mxu0
  %423 = vmatprep.mubr.f32.mxu0 0.0
  %424 = vmatmul.mubr.f32.gmra.mrb[0].mxu0 %v138
  %v425 = vpop.f32.mrb[0].mxu0
  %v426 = vadd.f32 0.0, %v425
  %v427 = vpop.f32.mrb[0].mxu0
  %428 = vmatprep.mubr.f32.mxu0 0.0
  %429 = vmatmul.mubr.f32.gmra.mrb[0].mxu0 %v141
  %v430 = vpop.f32.mrb[0].mxu0
  %v431 = vadd.f32 0.0, %v430
  %v432 = vpop.f32.mrb[0].mxu0
  %433 = vmatprep.mubr.f32.mxu0 0.0
  %434 = vmatmul.mubr.f32.gmra.mrb[0].mxu0 %v144
  %v435 = vpop.f32.mrb[0].mxu0
  %v436 = vadd.f32 0.0, %v435
  %v437 = vpop.f32.mrb[0].mxu0
  %438 = vmatprep.mubr.f32.mxu0 0.0
  %439 = vmatmul.mubr.f32.gmra.mrb[0].mxu0 %v147
  %v440 = vpop.f32.mrb[0].mxu0
  %v441 = vadd.f32 0.0, %v440
  %v442 = vpop.f32.mrb[0].mxu0
  %443 = vmatprep.mubr.f32.mxu0 0.0
  %444 = vmatmul.mubr.f32.gmra.mrb[0].mxu0 %v150
  %v445 = vpop.f32.mrb[0].mxu0
  %v446 = vadd.f32 0.0, %v445
  %v447 = vpop.f32.mrb[0].mxu0
  %448 = vmatprep.mubr.f32.mxu0 0.0
  %449 = vmatmul.mubr.f32.gmra.mrb[0].mxu0 %v153
  %v450 = vpop.f32.mrb[0].mxu0
  %v451 = vadd.f32 0.0, %v450
  %v452 = vpop.f32.mrb[0].mxu0
  %453 = vmatprep.mubr.f32.mxu0 0.0
  %454 = vmatmul.mubr.f32.gmra.mrb[0].mxu0 %v156
  %v455 = vpop.f32.mrb[0].mxu0
  %v456 = vadd.f32 0.0, %v455
  %v457 = vpop.f32.mrb[0].mxu0
  %458 = vmatprep.mubr.f32.mxu0 0.0
  %459 = vmatmul.mubr.f32.gmra.mrb[0].mxu0 %v159
  %v460 = vpop.f32.mrb[0].mxu0
  %v461 = vadd.f32 0.0, %v460
  %v462 = vpop.f32.mrb[0].mxu0
  %463 = vmatprep.mubr.f32.mxu0 0.0
  %464 = vmatmul.mubr.f32.gmra.mrb[0].mxu0 %v162
  %v465 = vpop.f32.mrb[0].mxu0
  %v466 = vadd.f32 0.0, %v465
  %v467 = vpop.f32.mrb[0].mxu0
  %468 = vmatprep.mubr.f32.mxu0 0.0
  %469 = vmatmul.mubr.f32.gmra.mrb[0].mxu0 %v165
  %v470 = vpop.f32.mrb[0].mxu0
  %v471 = vadd.f32 0.0, %v470
  %v472 = vpop.f32.mrb[0].mxu0
  %473 = vmatprep.mubr.f32.mxu0 0.0
  %474 = vmatmul.mubr.f32.gmra.mrb[0].mxu0 %v168
  %v475 = vpop.f32.mrb[0].mxu0
  %v476 = vadd.f32 0.0, %v475
  %v477 = vpop.f32.mrb[0].mxu0
  %478 = vmatprep.mubr.f32.mxu0 0.0
  %479 = vmatmul.mubr.f32.gmra.mrb[0].mxu0 %v171
  %v480 = vpop.f32.mrb[0].mxu0
  %v481 = vadd.f32 0.0, %v480
  %v482 = vpop.f32.mrb[0].mxu0
  %483 = vmatprep.mubr.f32.mxu0 0.0
  %484 = vmatmul.mubr.f32.gmra.mrb[0].mxu0 %v174
  %v485 = vpop.f32.mrb[0].mxu0
  %v486 = vadd.f32 0.0, %v485
  %v487 = vpop.f32.mrb[0].mxu0
  %488 = vmatprep.mubr.f32.mxu0 0.0
  %489 = vmatmul.mubr.f32.gmra.mrb[0].mxu0 %v177
  %v490 = vpop.f32.mrb[0].mxu0
  %v491 = vadd.f32 0.0, %v490
  %v492 = vpop.f32.mrb[0].mxu0
  %493 = vmatprep.mubr.f32.mxu0 0.0
  %494 = vmatmul.mubr.f32.gmra.mrb[0].mxu0 %v180
  %v495 = vpop.f32.mrb[0].mxu0
  %v496 = vadd.f32 0.0, %v495
  %v497 = vpop.f32.mrb[0].mxu0
  %498 = vmatprep.mubr.f32.mxu0 0.0
  %499 = vmatmul.mubr.f32.gmra.mrb[0].mxu0 %v183
  %v500 = vpop.f32.mrb[0].mxu0
  %v501 = vadd.f32 0.0, %v500
  %v502 = vpop.f32.mrb[0].mxu0
  %503 = vmatprep.mubr.f32.mxu0 0.0
  %504 = vmatmul.mubr.f32.gmra.mrb[0].mxu0 %v186
  %v505 = vpop.f32.mrb[0].mxu0
  %v506 = vadd.f32 0.0, %v505
  %v507 = vpop.f32.mrb[0].mxu0
  %508 = vmatprep.mubr.f32.mxu0 0.0
  %509 = vmatmul.mubr.f32.gmra.mrb[0].mxu0 %v189
  %v510 = vpop.f32.mrb[0].mxu0
  %v511 = vadd.f32 0.0, %v510
  %v512 = vpop.f32.mrb[0].mxu0
  %513 = vmatprep.mubr.f32.mxu0 0.0
  %514 = vmatmul.mubr.f32.gmra.mrb[0].mxu0 %v192
  %v515 = vpop.f32.mrb[0].mxu0
  %v516 = vadd.f32 0.0, %v515
  %v517 = vpop.f32.mrb[0].mxu0
  %518 = vmatprep.mubr.f32.mxu0 0.0
  %519 = vmatmul.mubr.f32.gmra.mrb[0].mxu0 %v195
  %v520 = vpop.f32.mrb[0].mxu0
  %v521 = vadd.f32 0.0, %v520
  %v522 = vpop.f32.mrb[0].mxu0
  %523 = vmatprep.mubr.f32.mxu0 0.0
  %524 = vmatmul.mubr.f32.gmra.mrb[0].mxu0 %v198
  %v525 = vpop.f32.mrb[0].mxu0
  %v526 = vadd.f32 0.0, %v525
  %v527 = vpop.f32.mrb[0].mxu0
  %528 = vmatprep.mubr.f32.mxu0 0.0
  %529 = vmatmul.mubr.f32.gmra.mrb[0].mxu0 %v201
  %v530 = vpop.f32.mrb[0].mxu0
  %v531 = vadd.f32 0.0, %v530
  %v532 = vpop.f32.mrb[0].mxu0
  %533 = vmatprep.mubr.f32.mxu0 0.0
  %534 = vmatmul.mubr.f32.gmra.mrb[0].mxu0 %v204
  %v535 = vpop.f32.mrb[0].mxu0
  %v536 = vadd.f32 0.0, %v535
  %v537 = vpop.f32.mrb[0].mxu0
  %538 = vmatprep.mubr.f32.mxu0 0.0
  %539 = vmatmul.mubr.f32.gmra.mrb[0].mxu0 %v207
  %v540 = vpop.f32.mrb[0].mxu0
  %v541 = vadd.f32 0.0, %v540
  %v542 = vpop.f32.mrb[0].mxu0
  %543 = vmatprep.mubr.f32.mxu0 0.0
  %544 = vmatmul.mubr.f32.gmra.mrb[0].mxu0 %v210
  %v545 = vpop.f32.mrb[0].mxu0
  %v546 = vadd.f32 0.0, %v545
  %v547 = vpop.f32.mrb[0].mxu0
  %548 = vmatprep.mubr.f32.mxu0 0.0
  %549 = vmatmul.mubr.f32.gmra.mrb[0].mxu0 %v213
  %v550 = vpop.f32.mrb[0].mxu0
  %v551 = vadd.f32 0.0, %v550
  %v552 = vpop.f32.mrb[0].mxu0
  %553 = vmatprep.mubr.f32.mxu0 0.0
  %554 = vmatmul.mubr.f32.gmra.mrb[0].mxu0 %v216
  %v555 = vpop.f32.mrb[0].mxu0
  %v556 = vadd.f32 0.0, %v555
  %v557 = vpop.f32.mrb[0].mxu0
  %558 = vmatprep.mubr.f32.mxu0 0.0
  %559 = vmatmul.mubr.f32.gmra.mrb[0].mxu0 %v219
  %v560 = vpop.f32.mrb[0].mxu0
  %v561 = vadd.f32 0.0, %v560
  %v562 = vpop.f32.mrb[0].mxu0
  %563 = vmatprep.mubr.f32.mxu0 0.0
  %564 = vmatmul.mubr.f32.gmra.mrb[0].mxu0 %v222
  %v565 = vpop.f32.mrb[0].mxu0
  %v566 = vadd.f32 0.0, %v565
  %v567 = vpop.f32.mrb[0].mxu0
  %568 = vmatprep.mubr.f32.mxu0 0.0
  %569 = vmatmul.mubr.f32.gmra.mrb[0].mxu0 %v225
  %v570 = vpop.f32.mrb[0].mxu0
  %v571 = vadd.f32 0.0, %v570
  %v572 = vpop.f32.mrb[0].mxu0
  %573 = vmatprep.mubr.f32.mxu0 0.0
  %574 = vmatmul.mubr.f32.gmra.mrb[0].mxu0 %v228
  %v575 = vpop.f32.mrb[0].mxu0
  %v576 = vadd.f32 0.0, %v575
  %v577 = vpop.f32.mrb[0].mxu0
  %578 = vmatprep.mubr.f32.mxu0 0.0
  %579 = vmatmul.mubr.f32.gmra.mrb[0].mxu0 %v231
  %v580 = vpop.f32.mrb[0].mxu0
  %v581 = vadd.f32 0.0, %v580
  %v582 = vpop.f32.mrb[0].mxu0
  %583 = vmatprep.mubr.f32.mxu0 0.0
  %584 = vmatmul.mubr.f32.gmra.mrb[0].mxu0 %v234
  %v585 = vpop.f32.mrb[0].mxu0
  %v586 = vadd.f32 0.0, %v585
  %v587 = vpop.f32.mrb[0].mxu0
  %588 = vmatprep.mubr.f32.mxu0 0.0
  %589 = vmatmul.mubr.f32.gmra.mrb[0].mxu0 %v237
  %v590 = vpop.f32.mrb[0].mxu0
  %v591 = vadd.f32 0.0, %v590
  %v592 = vpop.f32.mrb[0].mxu0
  %593 = vmatprep.mubr.f32.mxu0 0.0
  %594 = vmatmul.mubr.f32.gmra.mrb[0].mxu0 %v240
  %v595 = vpop.f32.mrb[0].mxu0
  %v596 = vadd.f32 0.0, %v595
  %v597 = vpop.f32.mrb[0].mxu0
  %598 = vmatprep.mubr.f32.mxu0 0.0
  %599 = vmatmul.mubr.f32.gmra.mrb[0].mxu0 %v243
  %v600 = vpop.f32.mrb[0].mxu0
  %v601 = vadd.f32 0.0, %v600
  %v602 = vpop.f32.mrb[0].mxu0
  %603 = vmatprep.mubr.f32.mxu0 0.0
  %604 = vmatmul.mubr.f32.gmra.mrb[0].mxu0 %v246
  %v605 = vpop.f32.mrb[0].mxu0
  %v606 = vadd.f32 0.0, %v605
  %v607 = vpop.f32.mrb[0].mxu0
  %608 = vmatprep.mubr.f32.mxu0 0.0
  %609 = vmatmul.mubr.f32.gmra.mrb[0].mxu0 %v249
  %v610 = vpop.f32.mrb[0].mxu0
  %v611 = vadd.f32 0.0, %v610
  %v612 = vpop.f32.mrb[0].mxu0
  %613 = vmatprep.mubr.f32.mxu0 0.0
  %614 = vmatmul.mubr.f32.gmra.mrb[0].mxu0 %v252
  %v615 = vpop.f32.mrb[0].mxu0
  %v616 = vadd.f32 0.0, %v615
  %v617 = vpop.f32.mrb[0].mxu0
  %618 = vmatprep.mubr.f32.mxu0 0.0
  %619 = vmatmul.mubr.f32.gmra.mrb[0].mxu0 %v255
  %v620 = vpop.f32.mrb[0].mxu0
  %v621 = vadd.f32 0.0, %v620
  %v622 = vpop.f32.mrb[0].mxu0
  %623 = vmatprep.mubr.f32.mxu0 0.0
  %624 = vmatmul.mubr.f32.gmra.mrb[0].mxu0 %v258
  %v625 = vpop.f32.mrb[0].mxu0
  %v626 = vadd.f32 0.0, %v625
  %v627 = vpop.f32.mrb[0].mxu0
  %628 = vmatprep.mubr.f32.mxu0 0.0
  %629 = vmatmul.mubr.f32.gmra.mrb[0].mxu0 %v261
  %v630 = vpop.f32.mrb[0].mxu0
  %v631 = vadd.f32 0.0, %v630
  %v632 = vpop.f32.mrb[0].mxu0
  %633 = vmatprep.mubr.f32.mxu0 0.0
  %634 = vmatmul.mubr.f32.gmra.mrb[0].mxu0 %v264
  %v635 = vpop.f32.mrb[0].mxu0
  %v636 = vadd.f32 0.0, %v635
  %v637 = vpop.f32.mrb[0].mxu0
  %638 = vmatprep.mubr.f32.mxu0 0.0
  %639 = vmatmul.mubr.f32.gmra.mrb[0].mxu0 %v267
  %v640 = vpop.f32.mrb[0].mxu0
  %v641 = vadd.f32 0.0, %v640
  %v642 = vpop.f32.mrb[0].mxu0
  %643 = vmatprep.mubr.f32.mxu0 0.0
  %644 = vmatmul.mubr.f32.gmra.mrb[0].mxu0 %v270
  %v645 = vpop.f32.mrb[0].mxu0
  %v646 = vadd.f32 0.0, %v645
  %v647 = vpop.f32.mrb[0].mxu0
  %648 = vmatprep.mubr.f32.mxu0 0.0
  %649 = vmatmul.mubr.f32.gmra.mrb[0].mxu0 %v273
  %v650 = vpop.f32.mrb[0].mxu0
  %v651 = vadd.f32 0.0, %v650
  %v652 = vpop.f32.mrb[0].mxu0
  %653 = vmatprep.mubr.f32.mxu0 0.0
  %654 = vmatmul.mubr.f32.gmra.mrb[0].mxu0 %v276
  %v655 = vpop.f32.mrb[0].mxu0
  %v656 = vadd.f32 0.0, %v655
  %v657 = vpop.f32.mrb[0].mxu0
  %658 = vmatprep.mubr.f32.mxu0 0.0
  %659 = vmatmul.mubr.f32.gmra.mrb[0].mxu0 %v279
  %v660 = vpop.f32.mrb[0].mxu0
  %v661 = vadd.f32 0.0, %v660
  %v662 = vpop.f32.mrb[0].mxu0
  %663 = vmatprep.mubr.f32.mxu0 0.0
  %664 = vmatmul.mubr.f32.gmra.mrb[0].mxu0 %v282
  %v665 = vpop.f32.mrb[0].mxu0
  %v666 = vadd.f32 0.0, %v665
  %v667 = vpop.f32.mrb[0].mxu0
  %668 = vdwg.mxu0
  %v669 = vmax.f32 %v351, 0.0
  %v670 = vmax.f32 %v356, 0.0
  %v671 = vmax.f32 %v361, 0.0
  %v672 = vmax.f32 %v366, 0.0
  %v673 = vmax.f32 %v371, 0.0
  %v674 = vmax.f32 %v376, 0.0
  %v675 = vmax.f32 %v381, 0.0
  %v676 = vmax.f32 %v386, 0.0
  %v677 = vmax.f32 %v391, 0.0
  %v678 = vmax.f32 %v396, 0.0
  %v679 = vmax.f32 %v401, 0.0
  %v680 = vmax.f32 %v406, 0.0
  %v681 = vmax.f32 %v411, 0.0
  %v682 = vmax.f32 %v416, 0.0
  %v683 = vmax.f32 %v421, 0.0
  %v684 = vmax.f32 %v426, 0.0
  %v685 = vmax.f32 %v431, 0.0
  %v686 = vmax.f32 %v436, 0.0
  %v687 = vmax.f32 %v441, 0.0
  %v688 = vmax.f32 %v446, 0.0
  %v689 = vmax.f32 %v451, 0.0
  %v690 = vmax.f32 %v456, 0.0
  %v691 = vmax.f32 %v461, 0.0
  %v692 = vmax.f32 %v466, 0.0
  %v693 = vmax.f32 %v471, 0.0
  %v694 = vmax.f32 %v476, 0.0
  %v695 = vmax.f32 %v481, 0.0
  %v696 = vmax.f32 %v486, 0.0
  %v697 = vmax.f32 %v491, 0.0
  %v698 = vmax.f32 %v496, 0.0
  %v699 = vmax.f32 %v501, 0.0
  %v700 = vmax.f32 %v506, 0.0
  %v701 = vmax.f32 %v511, 0.0
  %v702 = vmax.f32 %v516, 0.0
  %v703 = vmax.f32 %v521, 0.0
  %v704 = vmax.f32 %v526, 0.0
  %v705 = vmax.f32 %v531, 0.0
  %v706 = vmax.f32 %v536, 0.0
  %v707 = vmax.f32 %v541, 0.0
  %v708 = vmax.f32 %v546, 0.0
  %v709 = vmax.f32 %v551, 0.0
  %v710 = vmax.f32 %v556, 0.0
  %v711 = vmax.f32 %v561, 0.0
  %v712 = vmax.f32 %v566, 0.0
  %v713 = vmax.f32 %v571, 0.0
  %v714 = vmax.f32 %v576, 0.0
  %v715 = vmax.f32 %v581, 0.0
  %v716 = vmax.f32 %v586, 0.0
  %v717 = vmax.f32 %v591, 0.0
  %v718 = vmax.f32 %v596, 0.0
  %v719 = vmax.f32 %v601, 0.0
  %v720 = vmax.f32 %v606, 0.0
  %v721 = vmax.f32 %v611, 0.0
  %v722 = vmax.f32 %v616, 0.0
  %v723 = vmax.f32 %v621, 0.0
  %v724 = vmax.f32 %v626, 0.0
  %v725 = vmax.f32 %v631, 0.0
  %v726 = vmax.f32 %v636, 0.0
  %v727 = vmax.f32 %v641, 0.0
  %v728 = vmax.f32 %v646, 0.0
  %v729 = vmax.f32 %v651, 0.0
  %v730 = vmax.f32 %v656, 0.0
  %v731 = vmax.f32 %v661, 0.0
  %v732 = vmax.f32 %v666, 0.0
  %v733 = vld [vmem:[%s2] sm:$0xff]
  %v735 = vcombine.high %v733, %v733
  %v737 = vunpack.c.l.s4 1983009808
  %v738 = vunpack.c.0.s8 %v737
  %v739 = vlaneseq
  %v740 = vshrl.u32 %v739, 7
  %v741 = vsub.s32 %v738, %v740
  %v742 = vrot.slane %v733, %v741
  %v744 = vunpack.c.l.s4 1983009808
  %v745 = vunpack.c.0.s8 %v744
  %v746 = vlaneseq
  %v747 = vshrl.u32 %v746, 7
  %v748 = vsub.s32 %v745, %v747
  %v749 = vrot.slane %v735, %v748
  %v750 = vcombine.high %v742, %v742
  %v751 = vcombine.high %v749, %v749
  %756 = vmatprep.subr.mxu0 0.0
  %757 = vmatpush1.msra.mxu0 %v669
  %758 = vmatprep.subr.mxu0 0.0
  %759 = vmatpush1.msra.mxu0 %v670
  %760 = vmatprep.subr.mxu0 0.0
  %761 = vmatpush1.msra.mxu0 %v671
  %762 = vmatprep.subr.mxu0 0.0
  %763 = vmatpush1.msra.mxu0 %v672
  %764 = vmatprep.subr.mxu0 0.0
  %765 = vmatpush1.msra.mxu0 %v673
  %766 = vmatprep.subr.mxu0 0.0
  %767 = vmatpush1.msra.mxu0 %v674
  %768 = vmatprep.subr.mxu0 0.0
  %769 = vmatpush1.msra.mxu0 %v675
  %770 = vmatprep.subr.mxu0 0.0
  %771 = vmatpush1.msra.mxu0 %v676
  %772 = vmatprep.subr.mxu0 0.0
  %773 = vmatpush1.msra.mxu0 %v677
  %774 = vmatprep.subr.mxu0 0.0
  %775 = vmatpush1.msra.mxu0 %v678
  %776 = vmatprep.subr.mxu0 0.0
  %777 = vmatpush1.msra.mxu0 %v679
  %778 = vmatprep.subr.mxu0 0.0
  %779 = vmatpush1.msra.mxu0 %v680
  %780 = vmatprep.subr.mxu0 0.0
  %781 = vmatpush1.msra.mxu0 %v681
  %782 = vmatprep.subr.mxu0 0.0
  %783 = vmatpush1.msra.mxu0 %v682
  %784 = vmatprep.subr.mxu0 0.0
  %785 = vmatpush1.msra.mxu0 %v683
  %786 = vmatprep.subr.mxu0 0.0
  %787 = vmatpush1.msra.mxu0 %v684
  %788 = vmatprep.subr.mxu0 0.0
  %789 = vmatpush1.msra.mxu0 %v685
  %790 = vmatprep.subr.mxu0 0.0
  %791 = vmatpush1.msra.mxu0 %v686
  %792 = vmatprep.subr.mxu0 0.0
  %793 = vmatpush1.msra.mxu0 %v687
  %794 = vmatprep.subr.mxu0 0.0
  %795 = vmatpush1.msra.mxu0 %v688
  %796 = vmatprep.subr.mxu0 0.0
  %797 = vmatpush1.msra.mxu0 %v689
  %798 = vmatprep.subr.mxu0 0.0
  %799 = vmatpush1.msra.mxu0 %v690
  %800 = vmatprep.subr.mxu0 0.0
  %801 = vmatpush1.msra.mxu0 %v691
  %802 = vmatprep.subr.mxu0 0.0
  %803 = vmatpush1.msra.mxu0 %v692
  %804 = vmatprep.subr.mxu0 0.0
  %805 = vmatpush1.msra.mxu0 %v693
  %806 = vmatprep.subr.mxu0 0.0
  %807 = vmatpush1.msra.mxu0 %v694
  %808 = vmatprep.subr.mxu0 0.0
  %809 = vmatpush1.msra.mxu0 %v695
  %810 = vmatprep.subr.mxu0 0.0
  %811 = vmatpush1.msra.mxu0 %v696
  %812 = vmatprep.subr.mxu0 0.0
  %813 = vmatpush1.msra.mxu0 %v697
  %814 = vmatprep.subr.mxu0 0.0
  %815 = vmatpush1.msra.mxu0 %v698
  %816 = vmatprep.subr.mxu0 0.0
  %817 = vmatpush1.msra.mxu0 %v699
  %818 = vmatprep.subr.mxu0 0.0
  %819 = vmatpush1.msra.mxu0 %v700
  %820 = vmatprep.mubr.f32.mxu0 %v750
  %821 = vmatmul.mubr.f32.gmra.mrb[0].mxu0 %v742
  %v822 = vpop.f32.mrb[0].mxu0
  %v823 = vadd.f32 0.0, %v822
  %v824 = vpop.f32.mrb[0].mxu0
  %825 = vdwg.mxu0
  %826 = vmatprep.subr.mxu0 0.0
  %827 = vmatpush1.msra.mxu0 %v701
  %828 = vmatprep.subr.mxu0 0.0
  %829 = vmatpush1.msra.mxu0 %v702
  %830 = vmatprep.subr.mxu0 0.0
  %831 = vmatpush1.msra.mxu0 %v703
  %832 = vmatprep.subr.mxu0 0.0
  %833 = vmatpush1.msra.mxu0 %v704
  %834 = vmatprep.subr.mxu0 0.0
  %835 = vmatpush1.msra.mxu0 %v705
  %836 = vmatprep.subr.mxu0 0.0
  %837 = vmatpush1.msra.mxu0 %v706
  %838 = vmatprep.subr.mxu0 0.0
  %839 = vmatpush1.msra.mxu0 %v707
  %840 = vmatprep.subr.mxu0 0.0
  %841 = vmatpush1.msra.mxu0 %v708
  %842 = vmatprep.subr.mxu0 0.0
  %843 = vmatpush1.msra.mxu0 %v709
  %844 = vmatprep.subr.mxu0 0.0
  %845 = vmatpush1.msra.mxu0 %v710
  %846 = vmatprep.subr.mxu0 0.0
  %847 = vmatpush1.msra.mxu0 %v711
  %848 = vmatprep.subr.mxu0 0.0
  %849 = vmatpush1.msra.mxu0 %v712
  %850 = vmatprep.subr.mxu0 0.0
  %851 = vmatpush1.msra.mxu0 %v713
  %852 = vmatprep.subr.mxu0 0.0
  %853 = vmatpush1.msra.mxu0 %v714
  %854 = vmatprep.subr.mxu0 0.0
  %855 = vmatpush1.msra.mxu0 %v715
  %856 = vmatprep.subr.mxu0 0.0
  %857 = vmatpush1.msra.mxu0 %v716
  %858 = vmatprep.subr.mxu0 0.0
  %859 = vmatpush1.msra.mxu0 %v717
  %860 = vmatprep.subr.mxu0 0.0
  %861 = vmatpush1.msra.mxu0 %v718
  %862 = vmatprep.subr.mxu0 0.0
  %863 = vmatpush1.msra.mxu0 %v719
  %864 = vmatprep.subr.mxu0 0.0
  %865 = vmatpush1.msra.mxu0 %v720
  %866 = vmatprep.subr.mxu0 0.0
  %867 = vmatpush1.msra.mxu0 %v721
  %868 = vmatprep.subr.mxu0 0.0
  %869 = vmatpush1.msra.mxu0 %v722
  %870 = vmatprep.subr.mxu0 0.0
  %871 = vmatpush1.msra.mxu0 %v723
  %872 = vmatprep.subr.mxu0 0.0
  %873 = vmatpush1.msra.mxu0 %v724
  %874 = vmatprep.subr.mxu0 0.0
  %875 = vmatpush1.msra.mxu0 %v725
  %876 = vmatprep.subr.mxu0 0.0
  %877 = vmatpush1.msra.mxu0 %v726
  %878 = vmatprep.subr.mxu0 0.0
  %879 = vmatpush1.msra.mxu0 %v727
  %880 = vmatprep.subr.mxu0 0.0
  %881 = vmatpush1.msra.mxu0 %v728
  %882 = vmatprep.subr.mxu0 0.0
  %883 = vmatpush1.msra.mxu0 %v729
  %884 = vmatprep.subr.mxu0 0.0
  %885 = vmatpush1.msra.mxu0 %v730
  %886 = vmatprep.subr.mxu0 0.0
  %887 = vmatpush1.msra.mxu0 %v731
  %888 = vmatprep.subr.mxu0 0.0
  %889 = vmatpush1.msra.mxu0 %v732
  %890 = vmatprep.mubr.f32.mxu0 %v751
  %891 = vmatmul.mubr.f32.gmra.mrb[0].mxu0 %v749
  %v892 = vpop.f32.mrb[0].mxu0
  %v893 = vadd.f32 %v823, %v892
  %v894 = vpop.f32.mrb[0].mxu0
  %895 = vdwg.mxu0
  %v896 = vld [vmem:[%s3] sm:$0xff]
  %v897 = vld [vmem:[%s3 + $0x8] sm:$0xff]
  %v898 = vld [vmem:[%s3 + $0x10] sm:$0xff]
  %v899 = vld [vmem:[%s3 + $0x18] sm:$0xff]
  %v900 = vld [vmem:[%s4] sm:$0x1]
  %v902 = vlaneseq
  %v903 = vshrl.u32 %v902, 7
  %v904 = vsub.s32 0, %v903
  %v905 = vrot.slane %v900, %v904
  %v908 = vsel %vm91, %v893, 0
  %910 = vmatprep.subr.mxu0 0.0
  %911 = vmatpush1.msra.mxu0 %v896
  %912 = vmatprep.subr.mxu0 0.0
  %913 = vmatpush1.msra.mxu0 %v897
  %914 = vmatprep.subr.mxu0 0.0
  %915 = vmatpush1.msra.mxu0 %v898
  %916 = vmatprep.subr.mxu0 0.0
  %917 = vmatpush1.msra.mxu0 %v899
  %918 = vmatprep.subr.mxu0 0.0
  %919 = vmatpush1.msra.mxu0 0.0
  %920 = vmatprep.subr.mxu0 0.0
  %921 = vmatpush1.msra.mxu0 0.0
  %922 = vmatprep.subr.mxu0 0.0
  %923 = vmatpush1.msra.mxu0 0.0
  %924 = vmatprep.subr.mxu0 0.0
  %925 = vmatpush1.msra.mxu0 0.0
  %926 = vmatprep.subr.mxu0 0.0
  %927 = vmatpush1.msra.mxu0 0.0
  %928 = vmatprep.subr.mxu0 0.0
  %929 = vmatpush1.msra.mxu0 0.0
  %930 = vmatprep.subr.mxu0 0.0
  %931 = vmatpush1.msra.mxu0 0.0
  %932 = vmatprep.subr.mxu0 0.0
  %933 = vmatpush1.msra.mxu0 0.0
  %934 = vmatprep.subr.mxu0 0.0
  %935 = vmatpush1.msra.mxu0 0.0
  %936 = vmatprep.subr.mxu0 0.0
  %937 = vmatpush1.msra.mxu0 0.0
  %938 = vmatprep.subr.mxu0 0.0
  %939 = vmatpush1.msra.mxu0 0.0
  %940 = vmatprep.subr.mxu0 0.0
  %941 = vmatpush1.msra.mxu0 0.0
  %942 = vmatprep.subr.mxu0 0.0
  %943 = vmatpush1.msra.mxu0 0.0
  %944 = vmatprep.subr.mxu0 0.0
  %945 = vmatpush1.msra.mxu0 0.0
  %946 = vmatprep.subr.mxu0 0.0
  %947 = vmatpush1.msra.mxu0 0.0
  %948 = vmatprep.subr.mxu0 0.0
  %949 = vmatpush1.msra.mxu0 0.0
  %950 = vmatprep.subr.mxu0 0.0
  %951 = vmatpush1.msra.mxu0 0.0
  %952 = vmatprep.subr.mxu0 0.0
  %953 = vmatpush1.msra.mxu0 0.0
  %954 = vmatprep.subr.mxu0 0.0
  %955 = vmatpush1.msra.mxu0 0.0
  %956 = vmatprep.subr.mxu0 0.0
  %957 = vmatpush1.msra.mxu0 0.0
  %958 = vmatprep.subr.mxu0 0.0
  %959 = vmatpush1.msra.mxu0 0.0
  %960 = vmatprep.subr.mxu0 0.0
  %961 = vmatpush1.msra.mxu0 0.0
  %962 = vmatprep.subr.mxu0 0.0
  %963 = vmatpush1.msra.mxu0 0.0
  %964 = vmatprep.subr.mxu0 0.0
  %965 = vmatpush1.msra.mxu0 0.0
  %966 = vmatprep.subr.mxu0 0.0
  %967 = vmatpush1.msra.mxu0 0.0
  %968 = vmatprep.subr.mxu0 0.0
  %969 = vmatpush1.msra.mxu0 0.0
  %970 = vmatprep.subr.mxu0 0.0
  %971 = vmatpush1.msra.mxu0 0.0
  %972 = vmatprep.subr.mxu0 0.0
  %973 = vmatpush1.msra.mxu0 0.0
  %974 = vmatprep.mubr.f32.mxu0 0.0
  %975 = vmatmul.mubr.f32.gmra.mrb[0].mxu0 %v908
  %v976 = vpop.f32.mrb[0].mxu0
  %v977 = vadd.f32 %v905, %v976
  %v978 = vpop.f32.mrb[0].mxu0
  %979 = vdwg.mxu0
  %v980 = vld [vmem:[%s5] sm:$0xff]
  %v981 = vld [vmem:[%s5 + $0x8] sm:$0xff]
  %v982 = vld [vmem:[%s5 + $0x10] sm:$0xff]
  %v983 = vld [vmem:[%s5 + $0x18] sm:$0xff]
  %v985 = vsel %vm91, %v977, 0
  %987 = vmatprep.subr.mxu0 0.0
  %988 = vmatpush1.msra.mxu0 %v980
  %989 = vmatprep.subr.mxu0 0.0
  %990 = vmatpush1.msra.mxu0 %v981
  %991 = vmatprep.subr.mxu0 0.0
  %992 = vmatpush1.msra.mxu0 %v982
  %993 = vmatprep.subr.mxu0 0.0
  %994 = vmatpush1.msra.mxu0 %v983
  %995 = vmatprep.subr.mxu0 0.0
  %996 = vmatpush1.msra.mxu0 0.0
  %997 = vmatprep.subr.mxu0 0.0
  %998 = vmatpush1.msra.mxu0 0.0
  %999 = vmatprep.subr.mxu0 0.0
  %1000 = vmatpush1.msra.mxu0 0.0
  %1001 = vmatprep.subr.mxu0 0.0
  %1002 = vmatpush1.msra.mxu0 0.0
  %1003 = vmatprep.subr.mxu0 0.0
  %1004 = vmatpush1.msra.mxu0 0.0
  %1005 = vmatprep.subr.mxu0 0.0
  %1006 = vmatpush1.msra.mxu0 0.0
  %1007 = vmatprep.subr.mxu0 0.0
  %1008 = vmatpush1.msra.mxu0 0.0
  %1009 = vmatprep.subr.mxu0 0.0
  %1010 = vmatpush1.msra.mxu0 0.0
  %1011 = vmatprep.subr.mxu0 0.0
  %1012 = vmatpush1.msra.mxu0 0.0
  %1013 = vmatprep.subr.mxu0 0.0
  %1014 = vmatpush1.msra.mxu0 0.0
  %1015 = vmatprep.subr.mxu0 0.0
  %1016 = vmatpush1.msra.mxu0 0.0
  %1017 = vmatprep.subr.mxu0 0.0
  %1018 = vmatpush1.msra.mxu0 0.0
  %1019 = vmatprep.subr.mxu0 0.0
  %1020 = vmatpush1.msra.mxu0 0.0
  %1021 = vmatprep.subr.mxu0 0.0
  %1022 = vmatpush1.msra.mxu0 0.0
  %1023 = vmatprep.subr.mxu0 0.0
  %1024 = vmatpush1.msra.mxu0 0.0
  %1025 = vmatprep.subr.mxu0 0.0
  %1026 = vmatpush1.msra.mxu0 0.0
  %1027 = vmatprep.subr.mxu0 0.0
  %1028 = vmatpush1.msra.mxu0 0.0
  %1029 = vmatprep.subr.mxu0 0.0
  %1030 = vmatpush1.msra.mxu0 0.0
  %1031 = vmatprep.subr.mxu0 0.0
  %1032 = vmatpush1.msra.mxu0 0.0
  %1033 = vmatprep.subr.mxu0 0.0
  %1034 = vmatpush1.msra.mxu0 0.0
  %1035 = vmatprep.subr.mxu0 0.0
  %1036 = vmatpush1.msra.mxu0 0.0
  %1037 = vmatprep.subr.mxu0 0.0
  %1038 = vmatpush1.msra.mxu0 0.0
  %1039 = vmatprep.subr.mxu0 0.0
  %1040 = vmatpush1.msra.mxu0 0.0
  %1041 = vmatprep.subr.mxu0 0.0
  %1042 = vmatpush1.msra.mxu0 0.0
  %1043 = vmatprep.subr.mxu0 0.0
  %1044 = vmatpush1.msra.mxu0 0.0
  %1045 = vmatprep.subr.mxu0 0.0
  %1046 = vmatpush1.msra.mxu0 0.0
  %1047 = vmatprep.subr.mxu0 0.0
  %1048 = vmatpush1.msra.mxu0 0.0
  %1049 = vmatprep.subr.mxu0 0.0
  %1050 = vmatpush1.msra.mxu0 0.0
  %1051 = vmatprep.mubr.f32.mxu0 0.0
  %1052 = vmatmul.mubr.f32.gmra.mrb[0].mxu0 %v985
  %v1053 = vpop.f32.mrb[0].mxu0
  %v1054 = vadd.f32 0.0, %v1053
  %v1055 = vpop.f32.mrb[0].mxu0
  %1056 = vdwg.mxu0
  %1057 = vst [vmem:[%s6] sm:$0x3] %v1054
  // Predicated region
  $region26: #{ratp_forward.1} parent=0 // pred_check
    _
  $region27: #{ratp_forward.1} parent=0 // pred_check_branch
    %1059 = sbr.rel (0) target = $region29
  $region28: #{ratp_forward.1} parent=0 // pred_region
    _
  $region29: #{ratp_forward.1} parent=0 // pred_fallthru
    _
  // Predicated region
  $region30: #{ratp_forward.1} parent=0 // pred_check
    _
  $region31: #{ratp_forward.1} parent=0 // pred_check_branch
    %1061 = sbr.rel (0) target = $region33
  $region32: #{ratp_forward.1} parent=0 // pred_region
    _
  $region33: #{ratp_forward.1} parent=0 // pred_fallthru
    _

</llo_original>
